<compile_context>
chip_gen: v6e
topology: v6e:2x2x1
jax: 0.10.0
libtpu: 0.0.40
codegen_flags: <defaults>
</compile_context>

<pallas_src>
import functools

import jax
import jax.numpy as jnp
from jax import lax
from jax.experimental import pallas as pl
from jax.experimental.pallas import tpu as pltpu


def _sppf_kernel(col_ref, x_ref, o_ref, *, width, neg):
    x = x_ref[0]                                   # (c_tile, S): spatial flat on lanes
    s = x.shape[-1]

    col = col_ref[...]                             # (1, S) int32: flat index -> column
    idx = lax.broadcasted_iota(jnp.int32, (1, s), 1)

    # Tap offsets (flat-index deltas) and validity masks, hoisted once and shared by
    # all three cascaded pools. W taps must stay within the row; H taps within the
    # image. Out-of-range (and roll-wrapped) lanes are replaced by `neg`.
    w_taps = [(d, jnp.logical_and(col + d >= 0, col + d < width))
              for d in (-2, -1, 1, 2)]
    h_taps = [(d * width, jnp.logical_and(idx + d * width >= 0, idx + d * width < s))
              for d in (-2, -1, 1, 2)]

    def shift(v, d):
        # shifted[..., i] == v[..., i + d] for valid lanes (wrapped lanes get masked).
        k = (-d) % s
        if k == 0:
            return v
        if s % 128 == 0:
            return pltpu.roll(v, shift=k, axis=1)  # XLU lane rotate (dense case)
        # Conservative fallback for lane-unaligned H*W (e.g. 20x20): plain jnp.roll
        # (slices + concat). Correct but slower; never hit by the tests below.
        return jnp.roll(v, shift=k, axis=1)

    def pool5(v):
        # Separable 5x5 max with implicit -inf / dtype-min padding.
        t = v                                      # center tap, W pass
        for d, m in w_taps:
            t = jnp.maximum(t, jnp.where(m, shift(v, d), neg))
        u = t                                      # center tap, H pass
        for d, m in h_taps:
            u = jnp.maximum(u, jnp.where(m, shift(t, d), neg))
        return u

    o_ref[0, 0] = x                                # store each slab as soon as ready
    o1 = pool5(x)
    o_ref[0, 1] = o1
    o2 = pool5(o1)
    o_ref[0, 2] = o2
    o_ref[0, 3] = pool5(o2)


def _round_up(v, m):
    return (v + m - 1) // m * m


def _vmem_capacity_bytes():
    try:
        info = pltpu.get_tpu_info()
        for name in ("vmem_capacity_bytes", "vmem_bytes", "vmem_size_bytes"):
            val = getattr(info, name, None)
            if val:
                return int(val)
    except Exception:
        pass
    return 64 * 1024 * 1024            # conservative default (v7x per-TC VMEM)


def _pick_c_tile(n, c, bytes_per_channel, budget_bytes, min_steps=8):
    """Channel tile: must divide C and satisfy the (8,128) block rule (multiple of 8
    or the full channel dim). Prefer tiles under the per-block VMEM budget; among
    those prefer ones giving >= min_steps grid steps (pipelining + both v7x cores);
    then take the largest (amortize per-step overhead)."""
    cands = [t for t in range(1, c + 1) if c % t == 0 and (t % 8 == 0 or t == c)]
    fits = [t for t in cands if t * bytes_per_channel <= budget_bytes] or [min(cands)]
    enough = [t for t in fits if n * (c // t) >= min_steps]
    return max(enough) if enough else max(fits)


def sppf(x):
    n, c, h, w = x.shape
    s = h * w
    dtype = x.dtype
    if jnp.issubdtype(dtype, jnp.floating):
        neg = float("-inf")
    elif jnp.issubdtype(dtype, jnp.integer):
        neg = int(jnp.iinfo(dtype).min)
    else:
        raise NotImplementedError(f"SPPF kernel: unsupported dtype {dtype}")

    itemsize = jnp.dtype(dtype).itemsize
    cap = _vmem_capacity_bytes()
    # Per-input-block budget (output block is 4x): 4 MiB on 128 MiB-VMEM parts
    # (v5e/v6e), 2 MiB on 64 MiB parts (v7x).
    budget = (4 << 20) if cap >= (96 << 20) else (2 << 20)
    bytes_per_channel = _round_up(s, 128) * itemsize      # padded VMEM footprint
    c_tile = _pick_c_tile(n, c, bytes_per_channel, budget)

    block_in = c_tile * bytes_per_channel
    need = 10 * block_in + (2 << 20)   # 2x(in) + 2x(4x out) double-buffered + slack
    vmem_limit = int(min(max(min(cap // 2, 64 << 20), need), (cap * 9) // 10))

    # Free (contiguous) reshape; both spatial dims flattened onto the lane axis.
    x_flat = x.reshape(n, c, s)
    col = (jnp.arange(s, dtype=jnp.int32) % w).reshape(1, s)

    out = pl.pallas_call(
        functools.partial(_sppf_kernel, width=w, neg=neg),
        out_shape=jax.ShapeDtypeStruct((n, 4, c, s), dtype),
        grid=(n, c // c_tile),
        in_specs=[
            pl.BlockSpec((1, s), lambda i, j: (0, 0)),             # col map (tiny)
            pl.BlockSpec((1, c_tile, s), lambda i, j: (i, j, 0)),  # input block
        ],
        out_specs=pl.BlockSpec((1, 4, c_tile, s), lambda i, j: (i, 0, j, 0)),
        compiler_params=pltpu.CompilerParams(
            dimension_semantics=("parallel", "parallel"),
            vmem_limit_bytes=vmem_limit,
        ),
    )(col, x_flat)

    # (N, 4, C, S) -> (N, 4C, H, W): contiguous reshape == torch.cat([...], dim=1).
    return out.reshape(n, 4 * c, h, w)


def sppf_ref(x):
    """Pure-JAX reference (matches PyTorch MaxPool2d(5, 1, padding=2))."""
    def mp(v):
        return lax.reduce_window(
            v, -jnp.inf, lax.max,
            window_dimensions=(1, 1, 5, 5),
            window_strides=(1, 1, 1, 1),
            padding=((0, 0), (0, 0), (2, 2), (2, 2)))
    o1 = mp(x)
    o2 = mp(o1)
    o3 = mp(o2)
    return jnp.concatenate([x, o1, o2, o3], axis=1)


if __name__ == "__main__":
    key = jax.random.PRNGKey(0)
    k1, k2 = jax.random.split(key)

    # Canonical small test (NCHW, as the PyTorch module expects).
    x1 = jax.random.normal(k1, (2, 4, 16, 16), dtype=jnp.float32)
    out1 = jax.block_until_ready(sppf(x1))
    ref1 = sppf_ref(x1)
    assert out1.shape == (2, 16, 16, 16), out1.shape
    assert out1.dtype == x1.dtype
    assert jnp.allclose(out1, ref1), "Pallas SPPF mismatch vs reference (test 1)"

    # Larger channel count / non-square spatial: exercises the channel-tiled,
    # multi-step "parallel" grid path (c_tile < C).
    x2 = jax.random.normal(k2, (1, 64, 8, 16), dtype=jnp.float32)
    out2 = jax.block_until_ready(sppf(x2))
    assert out2.shape == (1, 256, 8, 16), out2.shape
    assert jnp.allclose(out2, sppf_ref(x2)), "Pallas SPPF mismatch vs reference (test 2)"

    print("KERNEL_OK")
</pallas_src>

<mosaic_0001>
module attributes {stable_mosaic.version = 11 : i64} {
  func.func @_sppf_kernel(%arg0: i32, %arg1: i32, %arg2: memref<1x256xi32, #tpu.memory_space<vmem>>, %arg3: memref<1x4x256xf32, #tpu.memory_space<vmem>>, %arg4: memref<1x4x4x256xf32, #tpu.memory_space<vmem>>) attributes {dimension_semantics = [#tpu.dimension_semantics<parallel>, #tpu.dimension_semantics<parallel>], iteration_bounds = array<i64: 2, 1>, scalar_prefetch = 0 : i64, scratch_operands = 0 : i64, tpu.core_type = #tpu.core_type<tc>, window_params = [{pipeline_mode = #tpu.pipeline_mode<synchronous>, transform_indices = @transform_0, window_bounds = array<i64: 1, 256>}, {transform_indices = @transform_1, window_bounds = array<i64: 1, 4, 256>}, {transform_indices = @transform_2, window_bounds = array<i64: 1, 4, 4, 256>}]} {
    %c0 = arith.constant 0 : index
    %c0_0 = arith.constant 0 : index
    %c0_1 = arith.constant 0 : index
    %0 = vector.load %arg3[%c0, %c0_0, %c0_1] : memref<1x4x256xf32, #tpu.memory_space<vmem>>, vector<1x4x256xf32>
    %1 = vector.shape_cast %0 : vector<1x4x256xf32> to vector<4x256xf32>
    %c0_2 = arith.constant 0 : index
    %c0_3 = arith.constant 0 : index
    %2 = vector.load %arg2[%c0_2, %c0_3] : memref<1x256xi32, #tpu.memory_space<vmem>>, vector<1x256xi32>
    %3 = tpu.iota {dimensions = array<i32: 1>} : vector<1x256xi32>
    %c-2_i32 = arith.constant -2 : i32
    %4 = vector.broadcast %c-2_i32 : i32 to vector<1x256xi32>
    %5 = arith.addi %2, %4 : vector<1x256xi32>
    %c0_i32 = arith.constant 0 : i32
    %6 = vector.broadcast %c0_i32 : i32 to vector<1x256xi32>
    %7 = arith.cmpi sge, %5, %6 : vector<1x256xi32>
    %c-2_i32_4 = arith.constant -2 : i32
    %8 = vector.broadcast %c-2_i32_4 : i32 to vector<1x256xi32>
    %9 = arith.addi %2, %8 : vector<1x256xi32>
    %c16_i32 = arith.constant 16 : i32
    %10 = vector.broadcast %c16_i32 : i32 to vector<1x256xi32>
    %11 = arith.cmpi slt, %9, %10 : vector<1x256xi32>
    %12 = arith.andi %7, %11 : vector<1x256xi1>
    %c-1_i32 = arith.constant -1 : i32
    %13 = vector.broadcast %c-1_i32 : i32 to vector<1x256xi32>
    %14 = arith.addi %2, %13 : vector<1x256xi32>
    %c0_i32_5 = arith.constant 0 : i32
    %15 = vector.broadcast %c0_i32_5 : i32 to vector<1x256xi32>
    %16 = arith.cmpi sge, %14, %15 : vector<1x256xi32>
    %c-1_i32_6 = arith.constant -1 : i32
    %17 = vector.broadcast %c-1_i32_6 : i32 to vector<1x256xi32>
    %18 = arith.addi %2, %17 : vector<1x256xi32>
    %c16_i32_7 = arith.constant 16 : i32
    %19 = vector.broadcast %c16_i32_7 : i32 to vector<1x256xi32>
    %20 = arith.cmpi slt, %18, %19 : vector<1x256xi32>
    %21 = arith.andi %16, %20 : vector<1x256xi1>
    %c1_i32 = arith.constant 1 : i32
    %22 = vector.broadcast %c1_i32 : i32 to vector<1x256xi32>
    %23 = arith.addi %2, %22 : vector<1x256xi32>
    %c0_i32_8 = arith.constant 0 : i32
    %24 = vector.broadcast %c0_i32_8 : i32 to vector<1x256xi32>
    %25 = arith.cmpi sge, %23, %24 : vector<1x256xi32>
    %c1_i32_9 = arith.constant 1 : i32
    %26 = vector.broadcast %c1_i32_9 : i32 to vector<1x256xi32>
    %27 = arith.addi %2, %26 : vector<1x256xi32>
    %c16_i32_10 = arith.constant 16 : i32
    %28 = vector.broadcast %c16_i32_10 : i32 to vector<1x256xi32>
    %29 = arith.cmpi slt, %27, %28 : vector<1x256xi32>
    %30 = arith.andi %25, %29 : vector<1x256xi1>
    %c2_i32 = arith.constant 2 : i32
    %31 = vector.broadcast %c2_i32 : i32 to vector<1x256xi32>
    %32 = arith.addi %2, %31 : vector<1x256xi32>
    %c0_i32_11 = arith.constant 0 : i32
    %33 = vector.broadcast %c0_i32_11 : i32 to vector<1x256xi32>
    %34 = arith.cmpi sge, %32, %33 : vector<1x256xi32>
    %c2_i32_12 = arith.constant 2 : i32
    %35 = vector.broadcast %c2_i32_12 : i32 to vector<1x256xi32>
    %36 = arith.addi %2, %35 : vector<1x256xi32>
    %c16_i32_13 = arith.constant 16 : i32
    %37 = vector.broadcast %c16_i32_13 : i32 to vector<1x256xi32>
    %38 = arith.cmpi slt, %36, %37 : vector<1x256xi32>
    %39 = arith.andi %34, %38 : vector<1x256xi1>
    %c-32_i32 = arith.constant -32 : i32
    %40 = vector.broadcast %c-32_i32 : i32 to vector<1x256xi32>
    %41 = arith.addi %3, %40 : vector<1x256xi32>
    %c0_i32_14 = arith.constant 0 : i32
    %42 = vector.broadcast %c0_i32_14 : i32 to vector<1x256xi32>
    %43 = arith.cmpi sge, %41, %42 : vector<1x256xi32>
    %c-32_i32_15 = arith.constant -32 : i32
    %44 = vector.broadcast %c-32_i32_15 : i32 to vector<1x256xi32>
    %45 = arith.addi %3, %44 : vector<1x256xi32>
    %c256_i32 = arith.constant 256 : i32
    %46 = vector.broadcast %c256_i32 : i32 to vector<1x256xi32>
    %47 = arith.cmpi slt, %45, %46 : vector<1x256xi32>
    %48 = arith.andi %43, %47 : vector<1x256xi1>
    %c-16_i32 = arith.constant -16 : i32
    %49 = vector.broadcast %c-16_i32 : i32 to vector<1x256xi32>
    %50 = arith.addi %3, %49 : vector<1x256xi32>
    %c0_i32_16 = arith.constant 0 : i32
    %51 = vector.broadcast %c0_i32_16 : i32 to vector<1x256xi32>
    %52 = arith.cmpi sge, %50, %51 : vector<1x256xi32>
    %c-16_i32_17 = arith.constant -16 : i32
    %53 = vector.broadcast %c-16_i32_17 : i32 to vector<1x256xi32>
    %54 = arith.addi %3, %53 : vector<1x256xi32>
    %c256_i32_18 = arith.constant 256 : i32
    %55 = vector.broadcast %c256_i32_18 : i32 to vector<1x256xi32>
    %56 = arith.cmpi slt, %54, %55 : vector<1x256xi32>
    %57 = arith.andi %52, %56 : vector<1x256xi1>
    %c16_i32_19 = arith.constant 16 : i32
    %58 = vector.broadcast %c16_i32_19 : i32 to vector<1x256xi32>
    %59 = arith.addi %3, %58 : vector<1x256xi32>
    %c0_i32_20 = arith.constant 0 : i32
    %60 = vector.broadcast %c0_i32_20 : i32 to vector<1x256xi32>
    %61 = arith.cmpi sge, %59, %60 : vector<1x256xi32>
    %c16_i32_21 = arith.constant 16 : i32
    %62 = vector.broadcast %c16_i32_21 : i32 to vector<1x256xi32>
    %63 = arith.addi %3, %62 : vector<1x256xi32>
    %c256_i32_22 = arith.constant 256 : i32
    %64 = vector.broadcast %c256_i32_22 : i32 to vector<1x256xi32>
    %65 = arith.cmpi slt, %63, %64 : vector<1x256xi32>
    %66 = arith.andi %61, %65 : vector<1x256xi1>
    %c32_i32 = arith.constant 32 : i32
    %67 = vector.broadcast %c32_i32 : i32 to vector<1x256xi32>
    %68 = arith.addi %3, %67 : vector<1x256xi32>
    %c0_i32_23 = arith.constant 0 : i32
    %69 = vector.broadcast %c0_i32_23 : i32 to vector<1x256xi32>
    %70 = arith.cmpi sge, %68, %69 : vector<1x256xi32>
    %c32_i32_24 = arith.constant 32 : i32
    %71 = vector.broadcast %c32_i32_24 : i32 to vector<1x256xi32>
    %72 = arith.addi %3, %71 : vector<1x256xi32>
    %c256_i32_25 = arith.constant 256 : i32
    %73 = vector.broadcast %c256_i32_25 : i32 to vector<1x256xi32>
    %74 = arith.cmpi slt, %72, %73 : vector<1x256xi32>
    %75 = arith.andi %70, %74 : vector<1x256xi1>
    %c0_26 = arith.constant 0 : index
    %c0_27 = arith.constant 0 : index
    %c0_28 = arith.constant 0 : index
    %c0_29 = arith.constant 0 : index
    %76 = vector.load %arg4[%c0_26, %c0_27, %c0_28, %c0_29] : memref<1x4x4x256xf32, #tpu.memory_space<vmem>>, vector<1x1x4x256xf32>
    %77 = vector.shape_cast %76 : vector<1x1x4x256xf32> to vector<4x256xf32>
    %78 = vector.shape_cast %1 : vector<4x256xf32> to vector<1x1x4x256xf32>
    tpu.vector_store %arg4[%c0_26, %c0_27, %c0_28, %c0_29], %78 {strides = array<i32>} : memref<1x4x4x256xf32, #tpu.memory_space<vmem>>, vector<1x1x4x256xf32>,
    %c2_i32_30 = arith.constant 2 : i32
    %79 = tpu.dynamic_rotate %1 by %c2_i32_30 dim 1 : vector<4x256xf32>, i32 -> vector<4x256xf32>
    %cst = arith.constant 0xFF800000 : f32
    %80 = vector.shape_cast %12 : vector<1x256xi1> to vector<1x256xi1>
    %81 = vector.broadcast %80 : vector<1x256xi1> to vector<4x256xi1>
    %82 = vector.broadcast %cst : f32 to vector<4x256xf32>
    %83 = arith.select %81, %79, %82 : vector<4x256xi1>, vector<4x256xf32>
    %84 = arith.maximumf %1, %83 : vector<4x256xf32>
    %c1_i32_31 = arith.constant 1 : i32
    %85 = tpu.dynamic_rotate %1 by %c1_i32_31 dim 1 : vector<4x256xf32>, i32 -> vector<4x256xf32>
    %cst_32 = arith.constant 0xFF800000 : f32
    %86 = vector.shape_cast %21 : vector<1x256xi1> to vector<1x256xi1>
    %87 = vector.broadcast %86 : vector<1x256xi1> to vector<4x256xi1>
    %88 = vector.broadcast %cst_32 : f32 to vector<4x256xf32>
    %89 = arith.select %87, %85, %88 : vector<4x256xi1>, vector<4x256xf32>
    %90 = arith.maximumf %84, %89 : vector<4x256xf32>
    %c255_i32 = arith.constant 255 : i32
    %91 = tpu.dynamic_rotate %1 by %c255_i32 dim 1 : vector<4x256xf32>, i32 -> vector<4x256xf32>
    %cst_33 = arith.constant 0xFF800000 : f32
    %92 = vector.shape_cast %30 : vector<1x256xi1> to vector<1x256xi1>
    %93 = vector.broadcast %92 : vector<1x256xi1> to vector<4x256xi1>
    %94 = vector.broadcast %cst_33 : f32 to vector<4x256xf32>
    %95 = arith.select %93, %91, %94 : vector<4x256xi1>, vector<4x256xf32>
    %96 = arith.maximumf %90, %95 : vector<4x256xf32>
    %c254_i32 = arith.constant 254 : i32
    %97 = tpu.dynamic_rotate %1 by %c254_i32 dim 1 : vector<4x256xf32>, i32 -> vector<4x256xf32>
    %cst_34 = arith.constant 0xFF800000 : f32
    %98 = vector.shape_cast %39 : vector<1x256xi1> to vector<1x256xi1>
    %99 = vector.broadcast %98 : vector<1x256xi1> to vector<4x256xi1>
    %100 = vector.broadcast %cst_34 : f32 to vector<4x256xf32>
    %101 = arith.select %99, %97, %100 : vector<4x256xi1>, vector<4x256xf32>
    %102 = arith.maximumf %96, %101 : vector<4x256xf32>
    %c32_i32_35 = arith.constant 32 : i32
    %103 = tpu.dynamic_rotate %102 by %c32_i32_35 dim 1 : vector<4x256xf32>, i32 -> vector<4x256xf32>
    %cst_36 = arith.constant 0xFF800000 : f32
    %104 = vector.shape_cast %48 : vector<1x256xi1> to vector<1x256xi1>
    %105 = vector.broadcast %104 : vector<1x256xi1> to vector<4x256xi1>
    %106 = vector.broadcast %cst_36 : f32 to vector<4x256xf32>
    %107 = arith.select %105, %103, %106 : vector<4x256xi1>, vector<4x256xf32>
    %108 = arith.maximumf %102, %107 : vector<4x256xf32>
    %c16_i32_37 = arith.constant 16 : i32
    %109 = tpu.dynamic_rotate %102 by %c16_i32_37 dim 1 : vector<4x256xf32>, i32 -> vector<4x256xf32>
    %cst_38 = arith.constant 0xFF800000 : f32
    %110 = vector.shape_cast %57 : vector<1x256xi1> to vector<1x256xi1>
    %111 = vector.broadcast %110 : vector<1x256xi1> to vector<4x256xi1>
    %112 = vector.broadcast %cst_38 : f32 to vector<4x256xf32>
    %113 = arith.select %111, %109, %112 : vector<4x256xi1>, vector<4x256xf32>
    %114 = arith.maximumf %108, %113 : vector<4x256xf32>
    %c240_i32 = arith.constant 240 : i32
    %115 = tpu.dynamic_rotate %102 by %c240_i32 dim 1 : vector<4x256xf32>, i32 -> vector<4x256xf32>
    %cst_39 = arith.constant 0xFF800000 : f32
    %116 = vector.shape_cast %66 : vector<1x256xi1> to vector<1x256xi1>
    %117 = vector.broadcast %116 : vector<1x256xi1> to vector<4x256xi1>
    %118 = vector.broadcast %cst_39 : f32 to vector<4x256xf32>
    %119 = arith.select %117, %115, %118 : vector<4x256xi1>, vector<4x256xf32>
    %120 = arith.maximumf %114, %119 : vector<4x256xf32>
    %c224_i32 = arith.constant 224 : i32
    %121 = tpu.dynamic_rotate %102 by %c224_i32 dim 1 : vector<4x256xf32>, i32 -> vector<4x256xf32>
    %cst_40 = arith.constant 0xFF800000 : f32
    %122 = vector.shape_cast %75 : vector<1x256xi1> to vector<1x256xi1>
    %123 = vector.broadcast %122 : vector<1x256xi1> to vector<4x256xi1>
    %124 = vector.broadcast %cst_40 : f32 to vector<4x256xf32>
    %125 = arith.select %123, %121, %124 : vector<4x256xi1>, vector<4x256xf32>
    %126 = arith.maximumf %120, %125 : vector<4x256xf32>
    %c0_41 = arith.constant 0 : index
    %c1 = arith.constant 1 : index
    %c0_42 = arith.constant 0 : index
    %c0_43 = arith.constant 0 : index
    %127 = vector.load %arg4[%c0_41, %c1, %c0_42, %c0_43] : memref<1x4x4x256xf32, #tpu.memory_space<vmem>>, vector<1x1x4x256xf32>
    %128 = vector.shape_cast %127 : vector<1x1x4x256xf32> to vector<4x256xf32>
    %129 = vector.shape_cast %126 : vector<4x256xf32> to vector<1x1x4x256xf32>
    tpu.vector_store %arg4[%c0_41, %c1, %c0_42, %c0_43], %129 {strides = array<i32>} : memref<1x4x4x256xf32, #tpu.memory_space<vmem>>, vector<1x1x4x256xf32>,
    %c2_i32_44 = arith.constant 2 : i32
    %130 = tpu.dynamic_rotate %126 by %c2_i32_44 dim 1 : vector<4x256xf32>, i32 -> vector<4x256xf32>
    %cst_45 = arith.constant 0xFF800000 : f32
    %131 = vector.shape_cast %12 : vector<1x256xi1> to vector<1x256xi1>
    %132 = vector.broadcast %131 : vector<1x256xi1> to vector<4x256xi1>
    %133 = vector.broadcast %cst_45 : f32 to vector<4x256xf32>
    %134 = arith.select %132, %130, %133 : vector<4x256xi1>, vector<4x256xf32>
    %135 = arith.maximumf %126, %134 : vector<4x256xf32>
    %c1_i32_46 = arith.constant 1 : i32
    %136 = tpu.dynamic_rotate %126 by %c1_i32_46 dim 1 : vector<4x256xf32>, i32 -> vector<4x256xf32>
    %cst_47 = arith.constant 0xFF800000 : f32
    %137 = vector.shape_cast %21 : vector<1x256xi1> to vector<1x256xi1>
    %138 = vector.broadcast %137 : vector<1x256xi1> to vector<4x256xi1>
    %139 = vector.broadcast %cst_47 : f32 to vector<4x256xf32>
    %140 = arith.select %138, %136, %139 : vector<4x256xi1>, vector<4x256xf32>
    %141 = arith.maximumf %135, %140 : vector<4x256xf32>
    %c255_i32_48 = arith.constant 255 : i32
    %142 = tpu.dynamic_rotate %126 by %c255_i32_48 dim 1 : vector<4x256xf32>, i32 -> vector<4x256xf32>
    %cst_49 = arith.constant 0xFF800000 : f32
    %143 = vector.shape_cast %30 : vector<1x256xi1> to vector<1x256xi1>
    %144 = vector.broadcast %143 : vector<1x256xi1> to vector<4x256xi1>
    %145 = vector.broadcast %cst_49 : f32 to vector<4x256xf32>
    %146 = arith.select %144, %142, %145 : vector<4x256xi1>, vector<4x256xf32>
    %147 = arith.maximumf %141, %146 : vector<4x256xf32>
    %c254_i32_50 = arith.constant 254 : i32
    %148 = tpu.dynamic_rotate %126 by %c254_i32_50 dim 1 : vector<4x256xf32>, i32 -> vector<4x256xf32>
    %cst_51 = arith.constant 0xFF800000 : f32
    %149 = vector.shape_cast %39 : vector<1x256xi1> to vector<1x256xi1>
    %150 = vector.broadcast %149 : vector<1x256xi1> to vector<4x256xi1>
    %151 = vector.broadcast %cst_51 : f32 to vector<4x256xf32>
    %152 = arith.select %150, %148, %151 : vector<4x256xi1>, vector<4x256xf32>
    %153 = arith.maximumf %147, %152 : vector<4x256xf32>
    %c32_i32_52 = arith.constant 32 : i32
    %154 = tpu.dynamic_rotate %153 by %c32_i32_52 dim 1 : vector<4x256xf32>, i32 -> vector<4x256xf32>
    %cst_53 = arith.constant 0xFF800000 : f32
    %155 = vector.shape_cast %48 : vector<1x256xi1> to vector<1x256xi1>
    %156 = vector.broadcast %155 : vector<1x256xi1> to vector<4x256xi1>
    %157 = vector.broadcast %cst_53 : f32 to vector<4x256xf32>
    %158 = arith.select %156, %154, %157 : vector<4x256xi1>, vector<4x256xf32>
    %159 = arith.maximumf %153, %158 : vector<4x256xf32>
    %c16_i32_54 = arith.constant 16 : i32
    %160 = tpu.dynamic_rotate %153 by %c16_i32_54 dim 1 : vector<4x256xf32>, i32 -> vector<4x256xf32>
    %cst_55 = arith.constant 0xFF800000 : f32
    %161 = vector.shape_cast %57 : vector<1x256xi1> to vector<1x256xi1>
    %162 = vector.broadcast %161 : vector<1x256xi1> to vector<4x256xi1>
    %163 = vector.broadcast %cst_55 : f32 to vector<4x256xf32>
    %164 = arith.select %162, %160, %163 : vector<4x256xi1>, vector<4x256xf32>
    %165 = arith.maximumf %159, %164 : vector<4x256xf32>
    %c240_i32_56 = arith.constant 240 : i32
    %166 = tpu.dynamic_rotate %153 by %c240_i32_56 dim 1 : vector<4x256xf32>, i32 -> vector<4x256xf32>
    %cst_57 = arith.constant 0xFF800000 : f32
    %167 = vector.shape_cast %66 : vector<1x256xi1> to vector<1x256xi1>
    %168 = vector.broadcast %167 : vector<1x256xi1> to vector<4x256xi1>
    %169 = vector.broadcast %cst_57 : f32 to vector<4x256xf32>
    %170 = arith.select %168, %166, %169 : vector<4x256xi1>, vector<4x256xf32>
    %171 = arith.maximumf %165, %170 : vector<4x256xf32>
    %c224_i32_58 = arith.constant 224 : i32
    %172 = tpu.dynamic_rotate %153 by %c224_i32_58 dim 1 : vector<4x256xf32>, i32 -> vector<4x256xf32>
    %cst_59 = arith.constant 0xFF800000 : f32
    %173 = vector.shape_cast %75 : vector<1x256xi1> to vector<1x256xi1>
    %174 = vector.broadcast %173 : vector<1x256xi1> to vector<4x256xi1>
    %175 = vector.broadcast %cst_59 : f32 to vector<4x256xf32>
    %176 = arith.select %174, %172, %175 : vector<4x256xi1>, vector<4x256xf32>
    %177 = arith.maximumf %171, %176 : vector<4x256xf32>
    %c0_60 = arith.constant 0 : index
    %c2 = arith.constant 2 : index
    %c0_61 = arith.constant 0 : index
    %c0_62 = arith.constant 0 : index
    %178 = vector.load %arg4[%c0_60, %c2, %c0_61, %c0_62] : memref<1x4x4x256xf32, #tpu.memory_space<vmem>>, vector<1x1x4x256xf32>
    %179 = vector.shape_cast %178 : vector<1x1x4x256xf32> to vector<4x256xf32>
    %180 = vector.shape_cast %177 : vector<4x256xf32> to vector<1x1x4x256xf32>
    tpu.vector_store %arg4[%c0_60, %c2, %c0_61, %c0_62], %180 {strides = array<i32>} : memref<1x4x4x256xf32, #tpu.memory_space<vmem>>, vector<1x1x4x256xf32>,
    %c2_i32_63 = arith.constant 2 : i32
    %181 = tpu.dynamic_rotate %177 by %c2_i32_63 dim 1 : vector<4x256xf32>, i32 -> vector<4x256xf32>
    %cst_64 = arith.constant 0xFF800000 : f32
    %182 = vector.shape_cast %12 : vector<1x256xi1> to vector<1x256xi1>
    %183 = vector.broadcast %182 : vector<1x256xi1> to vector<4x256xi1>
    %184 = vector.broadcast %cst_64 : f32 to vector<4x256xf32>
    %185 = arith.select %183, %181, %184 : vector<4x256xi1>, vector<4x256xf32>
    %186 = arith.maximumf %177, %185 : vector<4x256xf32>
    %c1_i32_65 = arith.constant 1 : i32
    %187 = tpu.dynamic_rotate %177 by %c1_i32_65 dim 1 : vector<4x256xf32>, i32 -> vector<4x256xf32>
    %cst_66 = arith.constant 0xFF800000 : f32
    %188 = vector.shape_cast %21 : vector<1x256xi1> to vector<1x256xi1>
    %189 = vector.broadcast %188 : vector<1x256xi1> to vector<4x256xi1>
    %190 = vector.broadcast %cst_66 : f32 to vector<4x256xf32>
    %191 = arith.select %189, %187, %190 : vector<4x256xi1>, vector<4x256xf32>
    %192 = arith.maximumf %186, %191 : vector<4x256xf32>
    %c255_i32_67 = arith.constant 255 : i32
    %193 = tpu.dynamic_rotate %177 by %c255_i32_67 dim 1 : vector<4x256xf32>, i32 -> vector<4x256xf32>
    %cst_68 = arith.constant 0xFF800000 : f32
    %194 = vector.shape_cast %30 : vector<1x256xi1> to vector<1x256xi1>
    %195 = vector.broadcast %194 : vector<1x256xi1> to vector<4x256xi1>
    %196 = vector.broadcast %cst_68 : f32 to vector<4x256xf32>
    %197 = arith.select %195, %193, %196 : vector<4x256xi1>, vector<4x256xf32>
    %198 = arith.maximumf %192, %197 : vector<4x256xf32>
    %c254_i32_69 = arith.constant 254 : i32
    %199 = tpu.dynamic_rotate %177 by %c254_i32_69 dim 1 : vector<4x256xf32>, i32 -> vector<4x256xf32>
    %cst_70 = arith.constant 0xFF800000 : f32
    %200 = vector.shape_cast %39 : vector<1x256xi1> to vector<1x256xi1>
    %201 = vector.broadcast %200 : vector<1x256xi1> to vector<4x256xi1>
    %202 = vector.broadcast %cst_70 : f32 to vector<4x256xf32>
    %203 = arith.select %201, %199, %202 : vector<4x256xi1>, vector<4x256xf32>
    %204 = arith.maximumf %198, %203 : vector<4x256xf32>
    %c32_i32_71 = arith.constant 32 : i32
    %205 = tpu.dynamic_rotate %204 by %c32_i32_71 dim 1 : vector<4x256xf32>, i32 -> vector<4x256xf32>
    %cst_72 = arith.constant 0xFF800000 : f32
    %206 = vector.shape_cast %48 : vector<1x256xi1> to vector<1x256xi1>
    %207 = vector.broadcast %206 : vector<1x256xi1> to vector<4x256xi1>
    %208 = vector.broadcast %cst_72 : f32 to vector<4x256xf32>
    %209 = arith.select %207, %205, %208 : vector<4x256xi1>, vector<4x256xf32>
    %210 = arith.maximumf %204, %209 : vector<4x256xf32>
    %c16_i32_73 = arith.constant 16 : i32
    %211 = tpu.dynamic_rotate %204 by %c16_i32_73 dim 1 : vector<4x256xf32>, i32 -> vector<4x256xf32>
    %cst_74 = arith.constant 0xFF800000 : f32
    %212 = vector.shape_cast %57 : vector<1x256xi1> to vector<1x256xi1>
    %213 = vector.broadcast %212 : vector<1x256xi1> to vector<4x256xi1>
    %214 = vector.broadcast %cst_74 : f32 to vector<4x256xf32>
    %215 = arith.select %213, %211, %214 : vector<4x256xi1>, vector<4x256xf32>
    %216 = arith.maximumf %210, %215 : vector<4x256xf32>
    %c240_i32_75 = arith.constant 240 : i32
    %217 = tpu.dynamic_rotate %204 by %c240_i32_75 dim 1 : vector<4x256xf32>, i32 -> vector<4x256xf32>
    %cst_76 = arith.constant 0xFF800000 : f32
    %218 = vector.shape_cast %66 : vector<1x256xi1> to vector<1x256xi1>
    %219 = vector.broadcast %218 : vector<1x256xi1> to vector<4x256xi1>
    %220 = vector.broadcast %cst_76 : f32 to vector<4x256xf32>
    %221 = arith.select %219, %217, %220 : vector<4x256xi1>, vector<4x256xf32>
    %222 = arith.maximumf %216, %221 : vector<4x256xf32>
    %c224_i32_77 = arith.constant 224 : i32
    %223 = tpu.dynamic_rotate %204 by %c224_i32_77 dim 1 : vector<4x256xf32>, i32 -> vector<4x256xf32>
    %cst_78 = arith.constant 0xFF800000 : f32
    %224 = vector.shape_cast %75 : vector<1x256xi1> to vector<1x256xi1>
    %225 = vector.broadcast %224 : vector<1x256xi1> to vector<4x256xi1>
    %226 = vector.broadcast %cst_78 : f32 to vector<4x256xf32>
    %227 = arith.select %225, %223, %226 : vector<4x256xi1>, vector<4x256xf32>
    %228 = arith.maximumf %222, %227 : vector<4x256xf32>
    %c0_79 = arith.constant 0 : index
    %c3 = arith.constant 3 : index
    %c0_80 = arith.constant 0 : index
    %c0_81 = arith.constant 0 : index
    %229 = vector.load %arg4[%c0_79, %c3, %c0_80, %c0_81] : memref<1x4x4x256xf32, #tpu.memory_space<vmem>>, vector<1x1x4x256xf32>
    %230 = vector.shape_cast %229 : vector<1x1x4x256xf32> to vector<4x256xf32>
    %231 = vector.shape_cast %228 : vector<4x256xf32> to vector<1x1x4x256xf32>
    tpu.vector_store %arg4[%c0_79, %c3, %c0_80, %c0_81], %231 {strides = array<i32>} : memref<1x4x4x256xf32, #tpu.memory_space<vmem>>, vector<1x1x4x256xf32>,
    return
  }
  func.func @transform_0(%arg0: i32, %arg1: i32) -> (i32, i32) {
    %c0_i32 = arith.constant 0 : i32
    %c0_i32_0 = arith.constant 0 : i32
    %c0_i32_1 = arith.constant 0 : i32
    return %c0_i32, %c0_i32_0 : i32, i32
  }
  func.func @transform_1(%arg0: i32, %arg1: i32) -> (i32, i32, i32) {
    %c0_i32 = arith.constant 0 : i32
    %c0_i32_0 = arith.constant 0 : i32
    return %arg0, %arg1, %c0_i32 : i32, i32, i32
  }
  func.func @transform_2(%arg0: i32, %arg1: i32) -> (i32, i32, i32, i32) {
    %c0_i32 = arith.constant 0 : i32
    %c0_i32_0 = arith.constant 0 : i32
    %c0_i32_1 = arith.constant 0 : i32
    return %arg0, %c0_i32, %arg1, %c0_i32_0 : i32, i32, i32, i32
  }
}

</mosaic_0001>

<llo_original>
// kernel: tpu_custom_call.1
$region0: #{tpu_custom_call.1}
  #allocation0 [shape = 'u32[]', space=smem, size = 0x4, offset = 0x4, fixed_abs, tag = 'smem constant byte address 0x4 - core index']
  #allocation1 [shape = 'u32[144,128]{1,0:T(1,128)}', space=vmem, size = 0x12000, scoped, tag = 'internal scratch']
  %s0 = inlined_call_operand.hbm [shape: s32[1,256], index: 0, kind: input, shape index: {}]
  %s1 = inlined_call_operand.hbm [shape: f32[2,4,256], index: 1, kind: input, shape index: {}]
  %s2 = inlined_call_operand.hbm [shape: f32[2,4,4,256], index: 2, kind: output, shape index: {}]
  %s3 = sld [smem:[#allocation0]]
  $region49: #{tpu_custom_call.1} parent=0
    _
  %s5 = ssub.s32 1, %s3
  %s6 = scalar_select 0, %s5, %s3
  $region1: #{tpu_custom_call.1} parent=0
    #allocation2 [shape = 'u8[1024]{0}', space=vmem, size = 0x400, scoped, tag = 'input window, operand 0, single buffered']
    #allocation3 [shape = 's32[2]{0}', space=sflag, size = 0x8, scoped, tag = 'scoped memory for tpu_custom_call.1']
    #allocation4 [shape = 's32[2]{0}', space=sflag, size = 0x8, scoped, tag = 'scoped memory for tpu_custom_call.1']
    #allocation5 [shape = 'u8[8192]{0}', space=vmem, size = 0x2000, scoped, tag = 'input window, operand 1']
    #allocation6 [shape = 's32[2]{0}', space=sflag, size = 0x8, scoped, tag = 'scoped memory for tpu_custom_call.1']
    #allocation7 [shape = 'u8[32768]{0}', space=vmem, size = 0x8000, scoped, tag = 'output window, operand 0']
    %7 = vsyncpa [#allocation3], 0
    %8 = vsyncpa [#allocation6], 0
    %s9 = scalar_lea.sflag [#allocation6], 1
    %10 = vsyncpa %s9, 0
    %11 = vsyncpa [#allocation4], 0
    %s12 = scalar_lea.sflag [#allocation4], 1
    %13 = vsyncpa %s12, 0
    loop: start=0, step=1, limit=4
    $region2: #{tpu_custom_call.1} parent=1 // loop_pre_header
      _
    $region3: #{tpu_custom_call.1} parent=1 // loop_header
      %s15 = sphi 0, %s19
      %p16 = scmp.ge.s32.totalorder %s15, 4
      %s22 = sphi 0, %s34
      %s23 = sphi 0, %s30
      %s24 = sphi 0, %s22
      %s25 = sphi 0, %s23
      %s26 = sphi 0, %s24
      %s27 = sphi 0, %s25
      %s35 = sphi 0, %s35
      %s37 = sphi 0, %s35
      %s38 = sphi 0, %s37
      %s52 = sphi 0, %s38
      %s60 = sphi 0, %s62
      %s63 = sphi 0, %s60
      %s64 = sphi 0, %s63
      %s80 = sphi 0, %s64
      %s88 = sphi 0, %s90
      %s91 = sphi 0, %s88
      %s92 = sphi 0, %s91
      %s108 = sphi 0, %s92
    $region4: #{tpu_custom_call.1} parent=1 // loop_header_branch
      %18 = sbr.rel (%p16) target = $region8
    $region5: #{tpu_custom_call.1} parent=1 // loop_body
      %s20 = ssub.s32 %s15, 1
      %s21 = ssub.s32 %s15, 2
      %s28 = sadd.s32 1, %s23
      %p29 = scmp.ge.s32.totalorder %s28, 1
      %s30 = scalar_select %p29, 0, %s28
      %s31 = sadd.s32 1, %s22
      %s32 = scalar_select %p29, %s31, %s22
      %p33 = scmp.ge.s32.totalorder %s32, 2
      %s34 = scalar_select %p33, 0, %s32
      %s36 = sadd.s32 %s35, 1
      %p39 = scmp.eq.s32.totalorder %s15, 1
      %p40 = scmp.ne.s32.totalorder %s35, %s37
      %p41 = scmp.eq.s32.totalorder %s15, 0
      %p42 = por %p40, %p41
      %p43 = scmp.ne.s32.totalorder %s35, %s37
      %p44 = scmp.eq.s32.totalorder %s20, 1
      %p45 = por %p43, %p44
      %p46 = scmp.ne.s32.totalorder %s37, %s38
      %p47 = scmp.eq.s32.totalorder %s20, 0
      %p48 = por %p46, %p47
      %p49 = scmp.ne.s32.totalorder %s37, %s38
      %p50 = scmp.eq.s32.totalorder %s21, 1
      %p51 = por %p49, %p50
      %p53 = scmp.ne.s32.totalorder %s38, %s52
      %p54 = scmp.eq.s32.totalorder %s21, 0
      %p55 = por %p53, %p54
      %s56 = ssub.s32 %s22, %s34
      %s57 = ssub.s32 %s23, %s30
      %s58 = sor.u32 %s56, %s57
      %p59 = scmp.eq.s32.totalorder %s58, 0
      %s61 = sadd.s32 %s60, 1
      %s62 = scalar_select %p59, %s60, %s61
      %p65 = pneg %p59
      %p66 = scmp.eq.s32.totalorder %s15, 1
      %p67 = por %p65, %p66
      %p68 = scmp.ne.s32.totalorder %s60, %s63
      %p69 = scmp.eq.s32.totalorder %s15, 0
      %p70 = por %p68, %p69
      %p71 = scmp.ne.s32.totalorder %s60, %s63
      %p72 = scmp.eq.s32.totalorder %s20, 1
      %p73 = por %p71, %p72
      %p74 = scmp.ne.s32.totalorder %s63, %s64
      %p75 = scmp.eq.s32.totalorder %s20, 0
      %p76 = por %p74, %p75
      %p77 = scmp.ne.s32.totalorder %s63, %s64
      %p78 = scmp.eq.s32.totalorder %s21, 1
      %p79 = por %p77, %p78
      %p81 = scmp.ne.s32.totalorder %s64, %s80
      %p82 = scmp.eq.s32.totalorder %s21, 0
      %p83 = por %p81, %p82
      %s84 = ssub.s32 %s22, %s34
      %s85 = ssub.s32 %s23, %s30
      %s86 = sor.u32 %s84, %s85
      %p87 = scmp.eq.s32.totalorder %s86, 0
      %s89 = sadd.s32 %s88, 1
      %s90 = scalar_select %p87, %s88, %s89
      %p93 = pneg %p87
      %p94 = scmp.eq.s32.totalorder %s15, 1
      %p95 = por %p93, %p94
      %p96 = scmp.ne.s32.totalorder %s88, %s91
      %p97 = scmp.eq.s32.totalorder %s15, 0
      %p98 = por %p96, %p97
      %p99 = scmp.ne.s32.totalorder %s88, %s91
      %p100 = scmp.eq.s32.totalorder %s20, 1
      %p101 = por %p99, %p100
      %p102 = scmp.ne.s32.totalorder %s91, %s92
      %p103 = scmp.eq.s32.totalorder %s20, 0
      %p104 = por %p102, %p103
      %p105 = scmp.ne.s32.totalorder %s91, %s92
      %p106 = scmp.eq.s32.totalorder %s21, 1
      %p107 = por %p105, %p106
      %p109 = scmp.ne.s32.totalorder %s92, %s108
      %p110 = scmp.eq.s32.totalorder %s21, 0
      %p111 = por %p109, %p110
      %p112 = scmp.le.s32.totalorder 1, %s15
      %p113 = scmp.lt.s32.totalorder %s15, 3
      %p114 = pnand %p112, %p113
      %p115 = pneg %p114
      // Predicated region
      $region9: #{tpu_custom_call.1} parent=5 // pred_check
        _
      $region10: #{tpu_custom_call.1} parent=5 // pred_check_branch
        %117 = sbr.rel (%p114) target = $region12
      $region11: #{tpu_custom_call.1} parent=5 // pred_region
        %s118 = ssub.s32 %s15, 1
        // Predicated region
        $region13: #{tpu_custom_call.1} parent=11 // pred_check
          %p119 = pneg %p48
        $region14: #{tpu_custom_call.1} parent=11 // pred_check_branch
          %121 = sbr.rel (%p119) target = $region16
        $region15: #{tpu_custom_call.1} parent=11 // pred_region
          %s123 = ssub.s32 32, 32
          %124 = vsyncadd [#allocation3], %s123
          %s126 = sshll.u32 [#allocation2], 4
          %s127 = int_to_ptr.vmem [resolvable:$true] %s126
          %129 = dma.hbm_to_vmem [thread:$0]  %s0, 32, %s127, [#allocation3]
        $region16: #{tpu_custom_call.1} parent=11 // pred_fallthru
          _
      $region12: #{tpu_custom_call.1} parent=5 // pred_fallthru
        _
      %p130 = scmp.lt.s32.totalorder %s15, 2
      // Predicated region
      $region17: #{tpu_custom_call.1} parent=5 // pred_check
        %p131 = pneg %p130
      $region18: #{tpu_custom_call.1} parent=5 // pred_check_branch
        %133 = sbr.rel (%p131) target = $region20
      $region19: #{tpu_custom_call.1} parent=5 // pred_region
        // Predicated region
        $region21: #{tpu_custom_call.1} parent=19 // pred_check
          %p134 = pneg %p70
        $region22: #{tpu_custom_call.1} parent=19 // pred_check_branch
          %136 = sbr.rel (%p134) target = $region24
        $region23: #{tpu_custom_call.1} parent=19 // pred_region
          %s137 = sand.u32 %s60, 1
          %s138 = scalar_lea.sflag [#allocation6], %s137
          %s139 = sand.u32 %s60, 1
          %s140 = smul.addr %s139, 8
          %s141 = scalar_lea.vmem [#allocation5], %s140
          %s143 = ssub.s32 128, 128
          %144 = vsyncadd %s138, %s143
          %s145 = smul.addr %s23, 2
          %s146 = smul.addr %s22, 2
          %s147 = sadd.s32 %s145, %s146
          %s148 = smul.addr %s147, 64
          %s149 = scalar_lea.hbm %s1, %s148
          %s151 = sshll.u32 %s141, 4
          %s152 = int_to_ptr.vmem [resolvable:$true] %s151
          %154 = dma.hbm_to_vmem [thread:$0]  %s149, 128, %s152, %s138
        $region24: #{tpu_custom_call.1} parent=19 // pred_fallthru
          _
      $region20: #{tpu_custom_call.1} parent=5 // pred_fallthru
        _
      %p155 = scmp.le.s32.totalorder 1, %s15
      %p156 = scmp.lt.s32.totalorder %s15, 3
      %p157 = pnand %p155, %p156
      %p158 = pneg %p157
      // Predicated region
      $region25: #{tpu_custom_call.1} parent=5 // pred_check
        _
      $region26: #{tpu_custom_call.1} parent=5 // pred_check_branch
        %160 = sbr.rel (%p157) target = $region28
      $region27: #{tpu_custom_call.1} parent=5 // pred_region
        %s161 = ssub.s32 %s15, 1
        // Predicated region
        $region29: #{tpu_custom_call.1} parent=27 // pred_check
          %p162 = pneg %p48
        $region30: #{tpu_custom_call.1} parent=27 // pred_check_branch
          %164 = sbr.rel (%p162) target = $region32
        $region31: #{tpu_custom_call.1} parent=27 // pred_region
          %165 = dma.done [#allocation3], 32
        $region32: #{tpu_custom_call.1} parent=27 // pred_fallthru
          _
        %s166 = sand.u32 %s63, 1
        %s167 = scalar_lea.sflag [#allocation6], %s166
        %s168 = sand.u32 %s63, 1
        %s169 = smul.addr %s168, 8
        %s170 = scalar_lea.vmem [#allocation5], %s169
        // Predicated region
        $region33: #{tpu_custom_call.1} parent=27 // pred_check
          %p171 = pneg %p76
        $region34: #{tpu_custom_call.1} parent=27 // pred_check_branch
          %173 = sbr.rel (%p171) target = $region36
        $region35: #{tpu_custom_call.1} parent=27 // pred_region
          %174 = dma.done %s167, 128
        $region36: #{tpu_custom_call.1} parent=27 // pred_fallthru
          _
        %p175 = pneg %p48
        %p176 = pneg %p45
        %s177 = sand.u32 %s63, 1
        %s178 = scalar_lea.sflag [#allocation6], %s177
        %s179 = sand.u32 %s63, 1
        %s180 = smul.addr %s179, 8
        %s181 = scalar_lea.vmem [#allocation5], %s180
        %p182 = pneg %p76
        %p183 = pneg %p73
        %p184 = pneg %p104
        %p185 = pneg %p101
        %s186 = sand.u32 %s91, 1
        %s187 = scalar_lea.sflag [#allocation4], %s186
        %s188 = sand.u32 %s91, 1
        %s189 = smul.addr %s188, 32
        %s190 = scalar_lea.vmem [#allocation7], %s189
        %v191 = vld [vmem:[%s170] sm:$0xff]
        %v192 = vld [vmem:[#allocation2] sm:$0x3]
        %v193 = vlaneseq
        %v194 = vand.u32 %v193, 127
        %v195 = vadd.s32 %v194, 128
        %v196 = vadd.s32 %v192, 4294967294
        %vm197 = vcmp.ge.s32.totalorder %v196, 0
        %vm198 = vcmp.lt.s32.totalorder %v196, 16
        %vm199 = vmand %vm197, %vm198
        %v200 = vadd.s32 %v192, 4294967295
        %vm201 = vcmp.ge.s32.totalorder %v200, 0
        %vm202 = vcmp.lt.s32.totalorder %v200, 16
        %vm203 = vmand %vm201, %vm202
        %v204 = vadd.s32 %v192, 1
        %vm205 = vcmp.ge.s32.totalorder %v204, 0
        %vm206 = vcmp.lt.s32.totalorder %v204, 16
        %vm207 = vmand %vm205, %vm206
        %v208 = vadd.s32 %v192, 2
        %vm209 = vcmp.ge.s32.totalorder %v208, 0
        %vm210 = vcmp.lt.s32.totalorder %v208, 16
        %vm211 = vmand %vm209, %vm210
        %v212 = vadd.s32 %v194, 4294967264
        %v213 = vadd.s32 %v195, 4294967264
        %vm214 = vcmp.ge.s32.totalorder %v212, 0
        %vm215 = vcmp.ge.s32.totalorder %v213, 0
        %vm216 = vcmp.lt.s32.totalorder %v212, 256
        %vm217 = vcmp.lt.s32.totalorder %v213, 256
        %vm218 = vmand %vm214, %vm216
        %vm219 = vmand %vm215, %vm217
        %v220 = vadd.s32 %v194, 4294967280
        %v221 = vadd.s32 %v195, 4294967280
        %vm222 = vcmp.ge.s32.totalorder %v220, 0
        %vm223 = vcmp.ge.s32.totalorder %v221, 0
        %vm224 = vcmp.lt.s32.totalorder %v220, 256
        %vm225 = vcmp.lt.s32.totalorder %v221, 256
        %vm226 = vmand %vm222, %vm224
        %vm227 = vmand %vm223, %vm225
        %v228 = vadd.s32 %v194, 16
        %v229 = vadd.s32 %v195, 16
        %vm230 = vcmp.ge.s32.totalorder %v228, 0
        %vm231 = vcmp.ge.s32.totalorder %v229, 0
        %vm232 = vcmp.lt.s32.totalorder %v228, 256
        %vm233 = vcmp.lt.s32.totalorder %v229, 256
        %vm234 = vmand %vm230, %vm232
        %vm235 = vmand %vm231, %vm233
        %v236 = vadd.s32 %v194, 32
        %v237 = vadd.s32 %v195, 32
        %vm238 = vcmp.ge.s32.totalorder %v236, 0
        %vm239 = vcmp.ge.s32.totalorder %v237, 0
        %vm240 = vcmp.lt.s32.totalorder %v236, 256
        %vm241 = vcmp.lt.s32.totalorder %v237, 256
        %vm242 = vmand %vm238, %vm240
        %vm243 = vmand %vm239, %vm241
        %244 = vst [vmem:[%s190] sm:$0xff] %v191
        %v246 = vcombine.high %v191, %v191
        %248 = vrot.lane.b32.xlu0 %v191, 2
        %v249 = vpop.permute.xlu0 %248
        %250 = vrot.lane.b32.xlu0 %v246, 2
        %v251 = vpop.permute.xlu0 %250
        %vm252 = vcmp.lt.s32.totalorder %v194, 2
        %v253 = vsel %vm252, %v249, %v251
        %v254 = vsel %vm252, %v251, %v249
        %v255 = vsel %vm199, 1, 0
        %v256 = vlaneseq
        %v257 = vshrl.u32 %v256, 7
        %v258 = vsub.s32 0, %v257
        %v259 = vrot.slane %v255, %v258
        %v260 = vlaneseq
        %v261 = vshrl.u32 %v260, 7
        %v262 = vsub.s32 1, %v261
        %v263 = vrot.slane %v255, %v262
        %vm264 = vcmp.eq.s32.totalorder %v259, 1
        %vm265 = vcmp.eq.s32.totalorder %v263, 1
        %v266 = vsel %vm264, %v254, -inf
        %v267 = vsel %vm265, %v253, -inf
        %v270 = vcombine.low %v266, %v267
        %v272 = vmax.f32 %v191, %v270
        %273 = vrot.lane.b32.xlu0 %v191, 1
        %v274 = vpop.permute.xlu0 %273
        %275 = vrot.lane.b32.xlu0 %v246, 1
        %v276 = vpop.permute.xlu0 %275
        %vm277 = vcmp.lt.s32.totalorder %v194, 1
        %v278 = vsel %vm277, %v274, %v276
        %v279 = vsel %vm277, %v276, %v274
        %v280 = vsel %vm203, 1, 0
        %v281 = vlaneseq
        %v282 = vshrl.u32 %v281, 7
        %v283 = vsub.s32 0, %v282
        %v284 = vrot.slane %v280, %v283
        %v285 = vlaneseq
        %v286 = vshrl.u32 %v285, 7
        %v287 = vsub.s32 1, %v286
        %v288 = vrot.slane %v280, %v287
        %vm289 = vcmp.eq.s32.totalorder %v284, 1
        %vm290 = vcmp.eq.s32.totalorder %v288, 1
        %v291 = vsel %vm289, %v279, -inf
        %v292 = vsel %vm290, %v278, -inf
        %v295 = vcombine.low %v291, %v292
        %v297 = vmax.f32 %v272, %v295
        %298 = vrot.lane.b32.xlu0 %v191, 127
        %v299 = vpop.permute.xlu0 %298
        %300 = vrot.lane.b32.xlu0 %v246, 127
        %v301 = vpop.permute.xlu0 %300
        %vm302 = vcmp.lt.s32.totalorder %v194, 127
        %v303 = vsel %vm302, %v299, %v301
        %v304 = vsel %vm302, %v301, %v299
        %v305 = vsel %vm207, 1, 0
        %v306 = vlaneseq
        %v307 = vshrl.u32 %v306, 7
        %v308 = vsub.s32 0, %v307
        %v309 = vrot.slane %v305, %v308
        %v310 = vlaneseq
        %v311 = vshrl.u32 %v310, 7
        %v312 = vsub.s32 1, %v311
        %v313 = vrot.slane %v305, %v312
        %vm314 = vcmp.eq.s32.totalorder %v309, 1
        %vm315 = vcmp.eq.s32.totalorder %v313, 1
        %v316 = vsel %vm314, %v303, -inf
        %v317 = vsel %vm315, %v304, -inf
        %v320 = vcombine.low %v316, %v317
        %v322 = vmax.f32 %v297, %v320
        %323 = vrot.lane.b32.xlu0 %v191, 126
        %v324 = vpop.permute.xlu0 %323
        %325 = vrot.lane.b32.xlu0 %v246, 126
        %v326 = vpop.permute.xlu0 %325
        %vm327 = vcmp.lt.s32.totalorder %v194, 126
        %v328 = vsel %vm327, %v324, %v326
        %v329 = vsel %vm327, %v326, %v324
        %v330 = vsel %vm211, 1, 0
        %v331 = vlaneseq
        %v332 = vshrl.u32 %v331, 7
        %v333 = vsub.s32 0, %v332
        %v334 = vrot.slane %v330, %v333
        %v335 = vlaneseq
        %v336 = vshrl.u32 %v335, 7
        %v337 = vsub.s32 1, %v336
        %v338 = vrot.slane %v330, %v337
        %vm339 = vcmp.eq.s32.totalorder %v334, 1
        %vm340 = vcmp.eq.s32.totalorder %v338, 1
        %v341 = vsel %vm339, %v328, -inf
        %v342 = vsel %vm340, %v329, -inf
        %v345 = vcombine.low %v341, %v342
        %v347 = vmax.f32 %v322, %v345
        %v349 = vcombine.high %v347, %v347
        %351 = vrot.lane.b32.xlu0 %v347, 32
        %v352 = vpop.permute.xlu0 %351
        %353 = vrot.lane.b32.xlu0 %v349, 32
        %v354 = vpop.permute.xlu0 %353
        %vm355 = vcmp.lt.s32.totalorder %v194, 32
        %v356 = vsel %vm355, %v352, %v354
        %v357 = vsel %vm355, %v354, %v352
        %v358 = vsel %vm218, 1, 0
        %v359 = vsel %vm219, 1, 0
        %vm360 = vcmp.eq.s32.totalorder %v358, 1
        %vm361 = vcmp.eq.s32.totalorder %v359, 1
        %v362 = vsel %vm360, %v357, -inf
        %v363 = vsel %vm361, %v356, -inf
        %v366 = vcombine.low %v362, %v363
        %v368 = vmax.f32 %v347, %v366
        %369 = vrot.lane.b32.xlu0 %v347, 16
        %v370 = vpop.permute.xlu0 %369
        %371 = vrot.lane.b32.xlu0 %v349, 16
        %v372 = vpop.permute.xlu0 %371
        %vm373 = vcmp.lt.s32.totalorder %v194, 16
        %v374 = vsel %vm373, %v370, %v372
        %v375 = vsel %vm373, %v372, %v370
        %v376 = vsel %vm226, 1, 0
        %v377 = vsel %vm227, 1, 0
        %vm378 = vcmp.eq.s32.totalorder %v376, 1
        %vm379 = vcmp.eq.s32.totalorder %v377, 1
        %v380 = vsel %vm378, %v375, -inf
        %v381 = vsel %vm379, %v374, -inf
        %v384 = vcombine.low %v380, %v381
        %v386 = vmax.f32 %v368, %v384
        %387 = vrot.lane.b32.xlu0 %v347, 112
        %v388 = vpop.permute.xlu0 %387
        %389 = vrot.lane.b32.xlu0 %v349, 112
        %v390 = vpop.permute.xlu0 %389
        %vm391 = vcmp.lt.s32.totalorder %v194, 112
        %v392 = vsel %vm391, %v388, %v390
        %v393 = vsel %vm391, %v390, %v388
        %v394 = vsel %vm234, 1, 0
        %v395 = vsel %vm235, 1, 0
        %vm396 = vcmp.eq.s32.totalorder %v394, 1
        %vm397 = vcmp.eq.s32.totalorder %v395, 1
        %v398 = vsel %vm396, %v392, -inf
        %v399 = vsel %vm397, %v393, -inf
        %v402 = vcombine.low %v398, %v399
        %v404 = vmax.f32 %v386, %v402
        %405 = vrot.lane.b32.xlu0 %v347, 96
        %v406 = vpop.permute.xlu0 %405
        %407 = vrot.lane.b32.xlu0 %v349, 96
        %v408 = vpop.permute.xlu0 %407
        %vm409 = vcmp.lt.s32.totalorder %v194, 96
        %v410 = vsel %vm409, %v406, %v408
        %v411 = vsel %vm409, %v408, %v406
        %v412 = vsel %vm242, 1, 0
        %v413 = vsel %vm243, 1, 0
        %vm414 = vcmp.eq.s32.totalorder %v412, 1
        %vm415 = vcmp.eq.s32.totalorder %v413, 1
        %v416 = vsel %vm414, %v410, -inf
        %v417 = vsel %vm415, %v411, -inf
        %v420 = vcombine.low %v416, %v417
        %v422 = vmax.f32 %v404, %v420
        %s423 = scalar_lea.vmem %s190, 8 [#allocation7]
        %424 = vst [vmem:[%s423] sm:$0xff] %v422
        %v426 = vcombine.high %v422, %v422
        %428 = vrot.lane.b32.xlu0 %v422, 2
        %v429 = vpop.permute.xlu0 %428
        %430 = vrot.lane.b32.xlu0 %v426, 2
        %v431 = vpop.permute.xlu0 %430
        %v432 = vsel %vm252, %v429, %v431
        %v433 = vsel %vm252, %v431, %v429
        %v434 = vsel %vm264, %v433, -inf
        %v435 = vsel %vm265, %v432, -inf
        %v438 = vcombine.low %v434, %v435
        %v440 = vmax.f32 %v422, %v438
        %441 = vrot.lane.b32.xlu0 %v422, 1
        %v442 = vpop.permute.xlu0 %441
        %443 = vrot.lane.b32.xlu0 %v426, 1
        %v444 = vpop.permute.xlu0 %443
        %v445 = vsel %vm277, %v442, %v444
        %v446 = vsel %vm277, %v444, %v442
        %v447 = vsel %vm289, %v446, -inf
        %v448 = vsel %vm290, %v445, -inf
        %v451 = vcombine.low %v447, %v448
        %v453 = vmax.f32 %v440, %v451
        %454 = vrot.lane.b32.xlu0 %v422, 127
        %v455 = vpop.permute.xlu0 %454
        %456 = vrot.lane.b32.xlu0 %v426, 127
        %v457 = vpop.permute.xlu0 %456
        %v458 = vsel %vm302, %v455, %v457
        %v459 = vsel %vm302, %v457, %v455
        %v460 = vsel %vm314, %v458, -inf
        %v461 = vsel %vm315, %v459, -inf
        %v464 = vcombine.low %v460, %v461
        %v466 = vmax.f32 %v453, %v464
        %467 = vrot.lane.b32.xlu0 %v422, 126
        %v468 = vpop.permute.xlu0 %467
        %469 = vrot.lane.b32.xlu0 %v426, 126
        %v470 = vpop.permute.xlu0 %469
        %v471 = vsel %vm327, %v468, %v470
        %v472 = vsel %vm327, %v470, %v468
        %v473 = vsel %vm339, %v471, -inf
        %v474 = vsel %vm340, %v472, -inf
        %v477 = vcombine.low %v473, %v474
        %v479 = vmax.f32 %v466, %v477
        %v481 = vcombine.high %v479, %v479
        %483 = vrot.lane.b32.xlu0 %v479, 32
        %v484 = vpop.permute.xlu0 %483
        %485 = vrot.lane.b32.xlu0 %v481, 32
        %v486 = vpop.permute.xlu0 %485
        %v487 = vsel %vm355, %v484, %v486
        %v488 = vsel %vm355, %v486, %v484
        %v489 = vsel %vm360, %v488, -inf
        %v490 = vsel %vm361, %v487, -inf
        %v493 = vcombine.low %v489, %v490
        %v495 = vmax.f32 %v479, %v493
        %496 = vrot.lane.b32.xlu0 %v479, 16
        %v497 = vpop.permute.xlu0 %496
        %498 = vrot.lane.b32.xlu0 %v481, 16
        %v499 = vpop.permute.xlu0 %498
        %v500 = vsel %vm373, %v497, %v499
        %v501 = vsel %vm373, %v499, %v497
        %v502 = vsel %vm378, %v501, -inf
        %v503 = vsel %vm379, %v500, -inf
        %v506 = vcombine.low %v502, %v503
        %v508 = vmax.f32 %v495, %v506
        %509 = vrot.lane.b32.xlu0 %v479, 112
        %v510 = vpop.permute.xlu0 %509
        %511 = vrot.lane.b32.xlu0 %v481, 112
        %v512 = vpop.permute.xlu0 %511
        %v513 = vsel %vm391, %v510, %v512
        %v514 = vsel %vm391, %v512, %v510
        %v515 = vsel %vm396, %v513, -inf
        %v516 = vsel %vm397, %v514, -inf
        %v519 = vcombine.low %v515, %v516
        %v521 = vmax.f32 %v508, %v519
        %522 = vrot.lane.b32.xlu0 %v479, 96
        %v523 = vpop.permute.xlu0 %522
        %524 = vrot.lane.b32.xlu0 %v481, 96
        %v525 = vpop.permute.xlu0 %524
        %v526 = vsel %vm409, %v523, %v525
        %v527 = vsel %vm409, %v525, %v523
        %v528 = vsel %vm414, %v526, -inf
        %v529 = vsel %vm415, %v527, -inf
        %v532 = vcombine.low %v528, %v529
        %v534 = vmax.f32 %v521, %v532
        %s535 = scalar_lea.vmem %s190, 16 [#allocation7]
        %536 = vst [vmem:[%s535] sm:$0xff] %v534
        %v538 = vcombine.high %v534, %v534
        %540 = vrot.lane.b32.xlu0 %v534, 2
        %v541 = vpop.permute.xlu0 %540
        %542 = vrot.lane.b32.xlu0 %v538, 2
        %v543 = vpop.permute.xlu0 %542
        %v544 = vsel %vm252, %v541, %v543
        %v545 = vsel %vm252, %v543, %v541
        %v546 = vsel %vm264, %v545, -inf
        %v547 = vsel %vm265, %v544, -inf
        %v550 = vcombine.low %v546, %v547
        %v552 = vmax.f32 %v534, %v550
        %553 = vrot.lane.b32.xlu0 %v534, 1
        %v554 = vpop.permute.xlu0 %553
        %555 = vrot.lane.b32.xlu0 %v538, 1
        %v556 = vpop.permute.xlu0 %555
        %v557 = vsel %vm277, %v554, %v556
        %v558 = vsel %vm277, %v556, %v554
        %v559 = vsel %vm289, %v558, -inf
        %v560 = vsel %vm290, %v557, -inf
        %v563 = vcombine.low %v559, %v560
        %v565 = vmax.f32 %v552, %v563
        %566 = vrot.lane.b32.xlu0 %v534, 127
        %v567 = vpop.permute.xlu0 %566
        %568 = vrot.lane.b32.xlu0 %v538, 127
        %v569 = vpop.permute.xlu0 %568
        %v570 = vsel %vm302, %v567, %v569
        %v571 = vsel %vm302, %v569, %v567
        %v572 = vsel %vm314, %v570, -inf
        %v573 = vsel %vm315, %v571, -inf
        %v576 = vcombine.low %v572, %v573
        %v578 = vmax.f32 %v565, %v576
        %579 = vrot.lane.b32.xlu0 %v534, 126
        %v580 = vpop.permute.xlu0 %579
        %581 = vrot.lane.b32.xlu0 %v538, 126
        %v582 = vpop.permute.xlu0 %581
        %v583 = vsel %vm327, %v580, %v582
        %v584 = vsel %vm327, %v582, %v580
        %v585 = vsel %vm339, %v583, -inf
        %v586 = vsel %vm340, %v584, -inf
        %v589 = vcombine.low %v585, %v586
        %v591 = vmax.f32 %v578, %v589
        %v593 = vcombine.high %v591, %v591
        %595 = vrot.lane.b32.xlu0 %v591, 32
        %v596 = vpop.permute.xlu0 %595
        %597 = vrot.lane.b32.xlu0 %v593, 32
        %v598 = vpop.permute.xlu0 %597
        %v599 = vsel %vm355, %v596, %v598
        %v600 = vsel %vm355, %v598, %v596
        %v601 = vsel %vm360, %v600, -inf
        %v602 = vsel %vm361, %v599, -inf
        %v605 = vcombine.low %v601, %v602
        %v607 = vmax.f32 %v591, %v605
        %608 = vrot.lane.b32.xlu0 %v591, 16
        %v609 = vpop.permute.xlu0 %608
        %610 = vrot.lane.b32.xlu0 %v593, 16
        %v611 = vpop.permute.xlu0 %610
        %v612 = vsel %vm373, %v609, %v611
        %v613 = vsel %vm373, %v611, %v609
        %v614 = vsel %vm378, %v613, -inf
        %v615 = vsel %vm379, %v612, -inf
        %v618 = vcombine.low %v614, %v615
        %v620 = vmax.f32 %v607, %v618
        %621 = vrot.lane.b32.xlu0 %v591, 112
        %v622 = vpop.permute.xlu0 %621
        %623 = vrot.lane.b32.xlu0 %v593, 112
        %v624 = vpop.permute.xlu0 %623
        %v625 = vsel %vm391, %v622, %v624
        %v626 = vsel %vm391, %v624, %v622
        %v627 = vsel %vm396, %v625, -inf
        %v628 = vsel %vm397, %v626, -inf
        %v631 = vcombine.low %v627, %v628
        %v633 = vmax.f32 %v620, %v631
        %634 = vrot.lane.b32.xlu0 %v591, 96
        %v635 = vpop.permute.xlu0 %634
        %636 = vrot.lane.b32.xlu0 %v593, 96
        %v637 = vpop.permute.xlu0 %636
        %v638 = vsel %vm409, %v635, %v637
        %v639 = vsel %vm409, %v637, %v635
        %v640 = vsel %vm414, %v638, -inf
        %v641 = vsel %vm415, %v639, -inf
        %v644 = vcombine.low %v640, %v641
        %v646 = vmax.f32 %v633, %v644
        %s647 = scalar_lea.vmem %s190, 24 [#allocation7]
        %648 = vst [vmem:[%s647] sm:$0xff] %v646
        %s649 = sand.u32 %s91, 1
        %s650 = scalar_lea.sflag [#allocation4], %s649
        %s651 = sand.u32 %s91, 1
        %s652 = smul.addr %s651, 32
        %s653 = scalar_lea.vmem [#allocation7], %s652
        // Predicated region
        $region37: #{tpu_custom_call.1} parent=27 // pred_check
          %p654 = pneg %p101
        $region38: #{tpu_custom_call.1} parent=27 // pred_check_branch
          %656 = sbr.rel (%p654) target = $region40
        $region39: #{tpu_custom_call.1} parent=27 // pred_region
          %s658 = ssub.s32 512, 512
          %659 = vsyncadd %s650, %s658
          %s660 = smul.addr %s25, 2
          %s661 = smul.addr %s24, 8
          %s662 = sadd.s32 %s660, %s661
          %s663 = smul.addr %s662, 64
          %s664 = scalar_lea.hbm %s2, %s663
          %s665 = sshll.u32 %s653, 4
          %s666 = int_to_ptr.vmem [resolvable:$true] %s665
          %671 = dma.vmem_to_hbm [thread:$0]  %s666, 512, %s664, %s650, 128, 128, 8
        $region40: #{tpu_custom_call.1} parent=27 // pred_fallthru
          _
      $region28: #{tpu_custom_call.1} parent=5 // pred_fallthru
        _
      %p672 = scmp.le.s32.totalorder 2, %s15
      // Predicated region
      $region41: #{tpu_custom_call.1} parent=5 // pred_check
        %p673 = pneg %p672
      $region42: #{tpu_custom_call.1} parent=5 // pred_check_branch
        %675 = sbr.rel (%p673) target = $region44
      $region43: #{tpu_custom_call.1} parent=5 // pred_region
        %s676 = ssub.s32 %s15, 2
        // Predicated region
        $region45: #{tpu_custom_call.1} parent=43 // pred_check
          %p677 = pneg %p107
        $region46: #{tpu_custom_call.1} parent=43 // pred_check_branch
          %679 = sbr.rel (%p677) target = $region48
        $region47: #{tpu_custom_call.1} parent=43 // pred_region
          %s680 = sand.u32 %s92, 1
          %s681 = scalar_lea.sflag [#allocation4], %s680
          %s682 = sand.u32 %s92, 1
          %s683 = smul.addr %s682, 32
          %s684 = scalar_lea.vmem [#allocation7], %s683
          %685 = dma.done %s681, 512
        $region48: #{tpu_custom_call.1} parent=43 // pred_fallthru
          _
      $region44: #{tpu_custom_call.1} parent=5 // pred_fallthru
        _
    $region6: #{tpu_custom_call.1} parent=1 // loop_footer
      %s19 = sadd.s32 1, %s15
    $region7: #{tpu_custom_call.1} parent=1 // loop_footer_branch
      %14 = sbr.rel target = $region3
    $region8: #{tpu_custom_call.1} parent=1 // loop_exit
      _
    %686 = vsyncpa [#allocation3], 1
    %s687 = scalar_lea.sflag [#allocation3], 1
    %688 = vsyncpa %s687, 1
    %689 = vsyncpa [#allocation6], 1
    %s690 = scalar_lea.sflag [#allocation6], 1
    %691 = vsyncpa %s690, 1
    %692 = vsyncpa [#allocation4], 1
    %s693 = scalar_lea.sflag [#allocation4], 1
    %694 = vsyncpa %s693, 1

</llo_original>
